<compile_context>
chip_gen: v7x
topology: tpu7x:2x2x1
jax: 0.10.0
libtpu: 0.0.40
codegen_flags: <defaults>
</compile_context>

<pallas_src>
import functools

import jax
import jax.numpy as jnp
from jax.experimental import pallas as pl
from jax.experimental.pallas import tpu as pltpu


def _independent_dropout_kernel(p, u_ref, x_ref, y_ref, xo_ref, yo_ref):
    keep = jnp.float32(1.0 - p)
    u = u_ref[...]                                      # (tile, 2) float32
    mask_x = (u[:, 0:1] < keep).astype(jnp.float32)     # (tile, 1)
    mask_y = (u[:, 1:2] < keep).astype(jnp.float32)     # (tile, 1)
    total = mask_x + mask_y
    scale = jnp.float32(2.0) / jnp.maximum(total, jnp.float32(1.0))
    # (tile, 1) * (tile, H): pure lane-broadcast multiply.
    xo_ref[...] = (x_ref[...] * (mask_x * scale)).astype(xo_ref.dtype)
    yo_ref[...] = (y_ref[...] * (mask_y * scale)).astype(yo_ref.dtype)


def _choose_row_tile(n_rows, hidden, itemsize, budget_bytes=24 * 1024 * 1024):
    """Largest row tile (multiple of 8) whose pipelined VMEM footprint fits."""
    # 2 inputs + 2 outputs, double-buffered by the pipeline, plus the tiny
    # uniform block (8 bytes/row).
    bytes_per_row = 2 * (4 * hidden * itemsize + 8)
    max_rows = max(8, budget_bytes // max(bytes_per_row, 1))
    tile = int(min(1024, max_rows))
    tile = max(8, (tile // 8) * 8)
    r8 = ((n_rows + 7) // 8) * 8
    return min(tile, r8)


def independent_dropout(x, y, seed, p=0.5, training=True):
    """Pallas IndependentDropout over two items x, y of shape [B, S, H]."""
    if not training:
        return x, y

    assert x.shape == y.shape and x.ndim == 3
    B, S, H = x.shape
    R = B * S

    # Per-position uniforms for the two items (one draw per (b, s) per item).
    key = jax.random.PRNGKey(seed)
    u = jax.random.uniform(key, (R, 2), dtype=jnp.float32)

    xf = x.reshape(R, H)
    yf = y.reshape(R, H)

    tile = _choose_row_tile(R, H, jnp.dtype(x.dtype).itemsize)
    rp = ((R + tile - 1) // tile) * tile
    if rp != R:
        pad = ((0, rp - R), (0, 0))
        xf = jnp.pad(xf, pad)
        yf = jnp.pad(yf, pad)
        u = jnp.pad(u, pad)
    grid = (rp // tile,)

    kernel = functools.partial(_independent_dropout_kernel, float(p))

    xo, yo = pl.pallas_call(
        kernel,
        out_shape=(
            jax.ShapeDtypeStruct((rp, H), x.dtype),
            jax.ShapeDtypeStruct((rp, H), y.dtype),
        ),
        grid=grid,
        in_specs=[
            pl.BlockSpec((tile, 2), lambda i: (i, 0)),   # uniforms
            pl.BlockSpec((tile, H), lambda i: (i, 0)),   # x row tile
            pl.BlockSpec((tile, H), lambda i: (i, 0)),   # y row tile
        ],
        out_specs=(
            pl.BlockSpec((tile, H), lambda i: (i, 0)),
            pl.BlockSpec((tile, H), lambda i: (i, 0)),
        ),
        compiler_params=pltpu.CompilerParams(
            dimension_semantics=("parallel",),           # megacore on v7x
            vmem_limit_bytes=32 * 1024 * 1024,
        ),
    )(u, xf, yf)

    xo = xo[:R].reshape(B, S, H)
    yo = yo[:R].reshape(B, S, H)
    return xo, yo


if __name__ == "__main__":
    key = jax.random.PRNGKey(0)
    kx, ky = jax.random.split(key)

    B, S, H = 2, 8, 32
    x = jax.random.normal(kx, (B, S, H), dtype=jnp.float32)
    y = jax.random.normal(ky, (B, S, H), dtype=jnp.float32)

    xo, yo = independent_dropout(x, y, seed=1234, p=0.5, training=True)
    jax.block_until_ready((xo, yo))

    # Sanity check: per (b, s) position each output row equals the input row
    # times a scalar in {0, 1, 2} (N=2, p=0.5), and eval mode is identity.
    def ratios(inp, out):
        r = jnp.where(jnp.abs(inp) > 1e-6, out / inp, 0.0)
        return r

    ok = True
    for inp, out in ((x, xo), (y, yo)):
        r = ratios(inp, out)
        ok &= bool(jnp.all(
            (jnp.abs(r) < 1e-4)
            | (jnp.abs(r - 1.0) < 1e-4)
            | (jnp.abs(r - 2.0) < 1e-4)
        ))
    assert ok, "unexpected per-position scale factor"

    xe, ye = independent_dropout(x, y, seed=1234, p=0.5, training=False)
    assert bool(jnp.all(xe == x)) and bool(jnp.all(ye == y))

    print("KERNEL_OK")
</pallas_src>

<mosaic_0001>
module attributes {stable_mosaic.version = 11 : i64} {
  func.func @_independent_dropout_kernel(%arg0: i32, %arg1: memref<16x2xf32, #tpu.memory_space<vmem>>, %arg2: memref<16x32xf32, #tpu.memory_space<vmem>>, %arg3: memref<16x32xf32, #tpu.memory_space<vmem>>, %arg4: memref<16x32xf32, #tpu.memory_space<vmem>>, %arg5: memref<16x32xf32, #tpu.memory_space<vmem>>) attributes {dimension_semantics = [#tpu.dimension_semantics<parallel>], iteration_bounds = array<i64: 1>, scalar_prefetch = 0 : i64, scratch_operands = 0 : i64, tpu.core_type = #tpu.core_type<tc>, window_params = [{transform_indices = @transform_0, window_bounds = array<i64: 16, 2>}, {transform_indices = @transform_1, window_bounds = array<i64: 16, 32>}, {transform_indices = @transform_2, window_bounds = array<i64: 16, 32>}, {transform_indices = @transform_3, window_bounds = array<i64: 16, 32>}, {transform_indices = @transform_4, window_bounds = array<i64: 16, 32>}]} {
    %c0 = arith.constant 0 : index
    %c0_0 = arith.constant 0 : index
    %0 = vector.load %arg1[%c0, %c0_0] : memref<16x2xf32, #tpu.memory_space<vmem>>, vector<16x2xf32>
    %1 = vector.extract_strided_slice %0 {offsets = [0, 0], sizes = [16, 1], strides = [1, 1]} : vector<16x2xf32> to vector<16x1xf32>
    %cst = arith.constant 5.000000e-01 : f32
    %2 = vector.broadcast %cst : f32 to vector<16x1xf32>
    %3 = arith.cmpf olt, %1, %2 : vector<16x1xf32>
    %4 = arith.extui %3 : vector<16x1xi1> to vector<16x1xi32>
    %5 = arith.sitofp %4 : vector<16x1xi32> to vector<16x1xf32>
    %6 = vector.extract_strided_slice %0 {offsets = [0, 1], sizes = [16, 1], strides = [1, 1]} : vector<16x2xf32> to vector<16x1xf32>
    %cst_1 = arith.constant 5.000000e-01 : f32
    %7 = vector.broadcast %cst_1 : f32 to vector<16x1xf32>
    %8 = arith.cmpf olt, %6, %7 : vector<16x1xf32>
    %9 = arith.extui %8 : vector<16x1xi1> to vector<16x1xi32>
    %10 = arith.sitofp %9 : vector<16x1xi32> to vector<16x1xf32>
    %11 = arith.addf %5, %10 : vector<16x1xf32>
    %cst_2 = arith.constant 1.000000e+00 : f32
    %12 = vector.broadcast %cst_2 : f32 to vector<16x1xf32>
    %13 = arith.maximumf %11, %12 : vector<16x1xf32>
    %cst_3 = arith.constant 2.000000e+00 : f32
    %14 = vector.broadcast %cst_3 : f32 to vector<16x1xf32>
    %15 = arith.divf %14, %13 : vector<16x1xf32>
    %c0_4 = arith.constant 0 : index
    %c0_5 = arith.constant 0 : index
    %16 = vector.load %arg2[%c0_4, %c0_5] : memref<16x32xf32, #tpu.memory_space<vmem>>, vector<16x32xf32>
    %17 = arith.mulf %5, %15 : vector<16x1xf32>
    %18 = vector.broadcast %17 : vector<16x1xf32> to vector<16x32xf32>
    %19 = arith.mulf %16, %18 : vector<16x32xf32>
    %c0_6 = arith.constant 0 : index
    %c0_7 = arith.constant 0 : index
    %20 = vector.load %arg4[%c0_6, %c0_7] : memref<16x32xf32, #tpu.memory_space<vmem>>, vector<16x32xf32>
    tpu.vector_store %arg4[%c0_6, %c0_7], %19 {strides = array<i32>} : memref<16x32xf32, #tpu.memory_space<vmem>>, vector<16x32xf32>,
    %c0_8 = arith.constant 0 : index
    %c0_9 = arith.constant 0 : index
    %21 = vector.load %arg3[%c0_8, %c0_9] : memref<16x32xf32, #tpu.memory_space<vmem>>, vector<16x32xf32>
    %22 = arith.mulf %10, %15 : vector<16x1xf32>
    %23 = vector.broadcast %22 : vector<16x1xf32> to vector<16x32xf32>
    %24 = arith.mulf %21, %23 : vector<16x32xf32>
    %c0_10 = arith.constant 0 : index
    %c0_11 = arith.constant 0 : index
    %25 = vector.load %arg5[%c0_10, %c0_11] : memref<16x32xf32, #tpu.memory_space<vmem>>, vector<16x32xf32>
    tpu.vector_store %arg5[%c0_10, %c0_11], %24 {strides = array<i32>} : memref<16x32xf32, #tpu.memory_space<vmem>>, vector<16x32xf32>,
    return
  }
  func.func @transform_0(%arg0: i32) -> (i32, i32) {
    %c0_i32 = arith.constant 0 : i32
    %c0_i32_0 = arith.constant 0 : i32
    return %arg0, %c0_i32 : i32, i32
  }
  func.func @transform_1(%arg0: i32) -> (i32, i32) {
    %c0_i32 = arith.constant 0 : i32
    %c0_i32_0 = arith.constant 0 : i32
    return %arg0, %c0_i32 : i32, i32
  }
  func.func @transform_2(%arg0: i32) -> (i32, i32) {
    %c0_i32 = arith.constant 0 : i32
    %c0_i32_0 = arith.constant 0 : i32
    return %arg0, %c0_i32 : i32, i32
  }
  func.func @transform_3(%arg0: i32) -> (i32, i32) {
    %c0_i32 = arith.constant 0 : i32
    %c0_i32_0 = arith.constant 0 : i32
    return %arg0, %c0_i32 : i32, i32
  }
  func.func @transform_4(%arg0: i32) -> (i32, i32) {
    %c0_i32 = arith.constant 0 : i32
    %c0_i32_0 = arith.constant 0 : i32
    return %arg0, %c0_i32 : i32, i32
  }
}

</mosaic_0001>

<llo_original>
// kernel: tpu_custom_call.1
$region0: #{tpu_custom_call.1}
  #allocation0 [shape = 'u32[]', space=smem, size = 0x4, offset = 0x4, fixed_abs, tag = 'smem constant byte address 0x4 - core index']
  #allocation1 [shape = 'u32[144,128]{1,0:T(1,128)}', space=vmem, size = 0x12000, scoped, tag = 'internal scratch']
  %s0 = inlined_call_operand.vmem [shape: f32[16,2], index: 0, kind: input, shape index: {}]
  %s1 = inlined_call_operand.vmem [shape: f32[16,32], index: 1, kind: input, shape index: {}]
  %s2 = inlined_call_operand.hbm [shape: f32[16,32], index: 2, kind: input, shape index: {}]
  %s3 = inlined_call_operand.hbm [shape: f32[16,32], index: 3, kind: output, shape index: {0}]
  %s4 = inlined_call_operand.hbm [shape: f32[16,32], index: 4, kind: output, shape index: {1}]
  %5 = xla_tuple %s3, %s4
  %s6 = sld [smem:[#allocation0]]
  $region34: #{tpu_custom_call.1} parent=0
    _
  %s8 = ssub.s32 1, %s6
  %s9 = scalar_select 0, %s8, %s6
  $region1: #{tpu_custom_call.1} parent=0
    #allocation2 [shape = 'u8[8192]{0}', space=vmem, size = 0x2000, scoped, tag = 'input window, operand 2, single buffered']
    #allocation3 [shape = 's32[1]{0}', space=sflag, size = 0x4, scoped, tag = 'scoped memory for tpu_custom_call.1']
    #allocation4 [shape = 's32[1]{0}', space=sflag, size = 0x4, scoped, tag = 'scoped memory for tpu_custom_call.1']
    #allocation5 [shape = 'u8[8192]{0}', space=vmem, size = 0x2000, scoped, tag = 'output window, operand 0, single buffered']
    #allocation6 [shape = 'u8[8192]{0}', space=vmem, size = 0x2000, scoped, tag = 'output window, operand 1, single buffered']
    #allocation7 [shape = 's32[1]{0}', space=sflag, size = 0x4, scoped, tag = 'scoped memory for tpu_custom_call.1']
    %10 = vsyncpa [#allocation3], 0
    %11 = vsyncpa [#allocation4], 0
    %12 = vsyncpa [#allocation7], 0
    // Predicated region
    $region2: #{tpu_custom_call.1} parent=1 // pred_check
      _
    $region3: #{tpu_custom_call.1} parent=1 // pred_check_branch
      %14 = sbr.rel (0) target = $region5
    $region4: #{tpu_custom_call.1} parent=1 // pred_region
      _
    $region5: #{tpu_custom_call.1} parent=1 // pred_fallthru
      _
    // Predicated region
    $region6: #{tpu_custom_call.1} parent=1 // pred_check
      _
    $region7: #{tpu_custom_call.1} parent=1 // pred_check_branch
      %16 = sbr.rel (0) target = $region9
    $region8: #{tpu_custom_call.1} parent=1 // pred_region
      _
    $region9: #{tpu_custom_call.1} parent=1 // pred_fallthru
      _
    // Predicated region
    $region10: #{tpu_custom_call.1} parent=1 // pred_check
      _
    $region11: #{tpu_custom_call.1} parent=1 // pred_check_branch
      %18 = sbr.rel (0) target = $region13
    $region12: #{tpu_custom_call.1} parent=1 // pred_region
      %s20 = ssub.s32 256, 256
      %21 = vsyncadd [#allocation3], %s20
      %s22 = sshll.u32 [#allocation2], 4
      %s23 = int_to_ptr.vmem [resolvable:$true] %s22
      %28 = dma.hbm_to_vmem [thread:$0]  %s2, 256, %s23, [#allocation3], 128, 128, 8
    $region13: #{tpu_custom_call.1} parent=1 // pred_fallthru
      _
    // Predicated region
    $region14: #{tpu_custom_call.1} parent=1 // pred_check
      _
    $region15: #{tpu_custom_call.1} parent=1 // pred_check_branch
      %30 = sbr.rel (0) target = $region17
    $region16: #{tpu_custom_call.1} parent=1 // pred_region
      %31 = dma.done [#allocation3], 256
    $region17: #{tpu_custom_call.1} parent=1 // pred_fallthru
      _
    %v32 = vld [vmem:[%s0] sm:$0xff]
    %v33 = vld [vmem:[%s0 + $0x8] sm:$0xff]
    %vm34 = vcmp.lt.f32.partialorder %v32, 0.5
    %vm35 = vcmp.lt.f32.partialorder %v33, 0.5
    %v36 = vsel %vm34, 1, 0
    %v37 = vsel %vm35, 1, 0
    %v38 = vcvt.s32.f32 %v36
    %v39 = vcvt.s32.f32 %v37
    %42 = vrot.lane.b32.xlu0 %v38, 127
    %v43 = vpop.permute.xlu0 %42
    %44 = vrot.lane.b32.xlu0 %v39, 127
    %v45 = vpop.permute.xlu0 %44
    %v48 = vadd.f32 %v38, %v43
    %v49 = vadd.f32 %v39, %v45
    %v50 = vmax.f32 %v48, 1.0
    %v51 = vmax.f32 %v49, 1.0
    %v52 = vrcp.pop %v50
    %v53 = vmul.f32 2.0, %v52
    %v54 = vrcp.pop %v51
    %v55 = vmul.f32 2.0, %v54
    %v56 = vld [vmem:[%s1] sm:$0xff]
    %v57 = vld [vmem:[%s1 + $0x8] sm:$0xff]
    %v58 = vmul.f32 %v38, %v53
    %v59 = vmul.f32 %v39, %v55
    %61 = vset.pattern.permute.xlu0 0
    %62 = vperm.xlu0 %61, %v58
    %v63 = vpop.permute.xlu0 %62
    %66 = vset.pattern.permute.xlu0 0
    %67 = vperm.xlu0 %66, %v59
    %v68 = vpop.permute.xlu0 %67
    %v70 = vmul.f32 %v56, %v63
    %v71 = vmul.f32 %v57, %v68
    %vm72 = vcmask 261120
    %73 = vst.msk [vmem:[#allocation5] sm:$0xff] %vm72, %v70
    %74 = vst.msk [vmem:[#allocation5 + $0x8] sm:$0xff] %vm72, %v71
    %v75 = vld [vmem:[#allocation2] sm:$0xff]
    %v76 = vld [vmem:[#allocation2 + $0x8] sm:$0xff]
    %79 = vrot.lane.b32.xlu0 %v53, 1
    %v80 = vpop.permute.xlu0 %79
    %81 = vrot.lane.b32.xlu0 %v55, 1
    %v82 = vpop.permute.xlu0 %81
    %v85 = vmul.f32 %v38, %v80
    %v86 = vmul.f32 %v39, %v82
    %88 = vset.pattern.permute.xlu0 1
    %89 = vperm.xlu0 %88, %v85
    %v90 = vpop.permute.xlu0 %89
    %93 = vset.pattern.permute.xlu0 1
    %94 = vperm.xlu0 %93, %v86
    %v95 = vpop.permute.xlu0 %94
    %v97 = vmul.f32 %v75, %v90
    %v98 = vmul.f32 %v76, %v95
    %99 = vst.msk [vmem:[#allocation6] sm:$0xff] %vm72, %v97
    %100 = vst.msk [vmem:[#allocation6 + $0x8] sm:$0xff] %vm72, %v98
    // Predicated region
    $region18: #{tpu_custom_call.1} parent=1 // pred_check
      _
    $region19: #{tpu_custom_call.1} parent=1 // pred_check_branch
      %102 = sbr.rel (0) target = $region21
    $region20: #{tpu_custom_call.1} parent=1 // pred_region
      %s104 = ssub.s32 256, 256
      %105 = vsyncadd [#allocation4], %s104
      %s106 = sshll.u32 [#allocation5], 4
      %s107 = int_to_ptr.vmem [resolvable:$true] %s106
      %112 = dma.vmem_to_hbm [thread:$0]  %s107, 256, %s3, [#allocation4], 128, 128, 8
    $region21: #{tpu_custom_call.1} parent=1 // pred_fallthru
      _
    // Predicated region
    $region22: #{tpu_custom_call.1} parent=1 // pred_check
      _
    $region23: #{tpu_custom_call.1} parent=1 // pred_check_branch
      %114 = sbr.rel (0) target = $region25
    $region24: #{tpu_custom_call.1} parent=1 // pred_region
      %s116 = ssub.s32 256, 256
      %117 = vsyncadd [#allocation7], %s116
      %s118 = sshll.u32 [#allocation6], 4
      %s119 = int_to_ptr.vmem [resolvable:$true] %s118
      %124 = dma.vmem_to_hbm [thread:$0]  %s119, 256, %s4, [#allocation7], 128, 128, 8
    $region25: #{tpu_custom_call.1} parent=1 // pred_fallthru
      _
    // Predicated region
    $region26: #{tpu_custom_call.1} parent=1 // pred_check
      _
    $region27: #{tpu_custom_call.1} parent=1 // pred_check_branch
      %126 = sbr.rel (0) target = $region29
    $region28: #{tpu_custom_call.1} parent=1 // pred_region
      %127 = dma.done [#allocation4], 256
    $region29: #{tpu_custom_call.1} parent=1 // pred_fallthru
      _
    // Predicated region
    $region30: #{tpu_custom_call.1} parent=1 // pred_check
      _
    $region31: #{tpu_custom_call.1} parent=1 // pred_check_branch
      %129 = sbr.rel (0) target = $region33
    $region32: #{tpu_custom_call.1} parent=1 // pred_region
      %130 = dma.done [#allocation7], 256
    $region33: #{tpu_custom_call.1} parent=1 // pred_fallthru
      _
    %131 = vsyncpa [#allocation3], 1
    %132 = vsyncpa [#allocation4], 1
    %133 = vsyncpa [#allocation7], 1

</llo_original>
